<compile_context>
chip_gen: v6e
topology: v6e:2x2x1
jax: 0.10.0
libtpu: 0.0.40
codegen_flags: <defaults>
</compile_context>

<pallas_src>
import functools

import jax
import jax.numpy as jnp
from jax.experimental import pallas as pl
from jax.experimental.pallas import tpu as pltpu


def _codebook_kernel(e_ref, et_ref, z_ref, zq_ref, idx_ref, sse_ref, *, hw, hw_pad, tn):
    """One (batch b, column tile t) grid step.

    e_ref  : (K, D) f32 codebook            (VMEM-resident across the grid)
    et_ref : (D, K) f32 codebook transposed (pre-transposed once in the wrapper)
    z_ref  : (D, TN) input tile             (lane-dense: columns on lanes)
    zq_ref : (D, TN) quantized output tile
    idx_ref: (1, TN) int32 argmin indices
    sse_ref: (1, 128) f32 per-step partial sum of squared error (lane-splat)
    """
    z = z_ref[...].astype(jnp.float32)            # (D, TN)
    e = e_ref[...].astype(jnp.float32)            # (K, D)
    et = et_ref[...].astype(jnp.float32)          # (D, K)
    K = e.shape[0]

    # d = ||z||^2 + ||e||^2 - 2 * (e @ z)  -> (K, TN); identical to the PyTorch
    # formula so first-index argmin tie-breaking matches the reference exactly.
    z2 = jnp.sum(z * z, axis=0, keepdims=True)                       # (1, TN)
    e2 = jnp.sum(e * e, axis=1, keepdims=True)                       # (K, 1)
    scores = jnp.dot(e, z, preferred_element_type=jnp.float32)       # (K, TN)  MXU
    d = z2 + e2 - 2.0 * scores                                       # (K, TN)

    # First-index argmin over K via sublane min-reduce (XLU) + equality trick.
    # d_min is an exact element of d, so == holds for at least one row; taking
    # the min index among equal rows preserves first-index semantics exactly.
    k_iota = jax.lax.broadcasted_iota(jnp.int32, (K, 1), 0).astype(jnp.float32)
    d_min = jnp.min(d, axis=0, keepdims=True)                        # (1, TN)
    best_k = jnp.min(jnp.where(d == d_min, k_iota, jnp.float32(K)),
                     axis=0, keepdims=True)                          # (1, TN) f32

    # Gather the selected codebook rows on the MXU: (D,K) @ onehot(K,TN) -> (D,TN).
    onehot = (k_iota == best_k).astype(jnp.float32)                  # (K, TN)
    zq = jnp.dot(et, onehot, preferred_element_type=jnp.float32)     # (D, TN)

    zq_ref[...] = zq.astype(zq_ref.dtype)
    idx_ref[...] = best_k.astype(jnp.int32)

    # Per-step partial SSE for the commitment/codebook loss.
    diff = zq - z
    sq = jnp.sum(diff * diff, axis=0, keepdims=True)                 # (1, TN)
    if hw_pad != hw:  # static (trace-time): mask padded columns only if any exist
        col = pl.program_id(1) * tn + jax.lax.broadcasted_iota(jnp.int32, (1, tn), 1)
        sq = jnp.where(col < hw, sq, 0.0)
    sse = jnp.sum(sq)
    sse_ref[...] = jnp.broadcast_to(sse, (1, 128)).astype(jnp.float32)


def _cdiv(a, b):
    return (a + b - 1) // b


def _plan_column_tiles(hw, batch, tn_cap=16384):
    """Pick (num_tiles, TN): TN a multiple of 128, TN * num_tiles >= hw.

    Prefers an exact cover of hw (no wrapper-side pad / output slicing) and at
    least 2 total grid steps so both v7x TensorCores get work.
    """
    LANE = 128
    nblk = max(1, _cdiv(hw, LANE))                  # 128-column blocks covering hw
    cap_blks = max(1, tn_cap // LANE)
    min_tiles = _cdiv(nblk, cap_blks)
    if batch * min_tiles < 2 and nblk >= 2:         # v7x: feed both TensorCores
        min_tiles = 2
    num_tiles = min_tiles
    for t in range(min_tiles, nblk + 1):            # smallest exact divisor >= min_tiles
        if nblk % t == 0:
            if (nblk // t) * 4 >= _cdiv(nblk, min_tiles):  # don't shrink tiles > 4x
                num_tiles = t
            break
    tn = _cdiv(nblk, num_tiles) * LANE
    return num_tiles, tn


@functools.partial(jax.jit, static_argnames=("beta",))
def codebook_forward(z, embedding, beta):
    """z: (B, C, H, W) with C == latent_dim; embedding: (K, D). Forward pass only."""
    B, C, H, W = z.shape
    D = C
    K, D_e = embedding.shape
    assert D_e == D
    HW = H * W
    N = B * HW

    # Lane-dense layout: (B, C, H*W) is a free reshape of NCHW (no transposes).
    z3 = z.reshape(B, D, HW)

    num_tiles, TN = _plan_column_tiles(HW, B)
    HW_pad = TN * num_tiles
    if HW_pad != HW:    # extra HBM pass only when HW cannot be covered exactly
        z3 = jnp.pad(z3, ((0, 0), (0, 0), (0, HW_pad - HW)))

    emb = embedding.astype(jnp.float32)          # (K, D)
    emb_t = emb.T                                # (D, K), transposed once outside

    kernel = functools.partial(_codebook_kernel, hw=HW, hw_pad=HW_pad, tn=TN)

    zq3, idx3, sse_part = pl.pallas_call(
        kernel,
        out_shape=(
            jax.ShapeDtypeStruct((B, D, HW_pad), z.dtype),
            jax.ShapeDtypeStruct((B, 1, HW_pad), jnp.int32),
            jax.ShapeDtypeStruct((B, num_tiles, 1, 128), jnp.float32),
        ),
        grid_spec=pltpu.PrefetchScalarGridSpec(
            num_scalar_prefetch=0,
            grid=(B, num_tiles),
            in_specs=[
                pl.BlockSpec((K, D), lambda b, t: (0, 0)),             # codebook, resident
                pl.BlockSpec((D, K), lambda b, t: (0, 0)),             # codebook^T, resident
                pl.BlockSpec((None, D, TN), lambda b, t: (b, 0, t)),   # z tile (D, TN)
            ],
            out_specs=[
                pl.BlockSpec((None, D, TN), lambda b, t: (b, 0, t)),        # z_q tile
                pl.BlockSpec((None, 1, TN), lambda b, t: (b, 0, t)),        # indices tile
                pl.BlockSpec((None, None, 1, 128), lambda b, t: (b, t, 0, 0)),  # sse partial
            ],
        ),
        compiler_params=pltpu.CompilerParams(
            dimension_semantics=("parallel", "parallel")),
    )(emb, emb_t, z3)

    # Forward value of z + (z_q - z).detach() is z_q; already NCHW after reshape.
    if HW_pad != HW:
        zq3 = zq3[:, :, :HW]
        idx3 = idx3[:, :, :HW]
    z_q = zq3.reshape(B, D, H, W)
    min_encoding_indices = idx3.reshape(-1)      # ordering b*H*W + h*W + w

    sse = jnp.sum(sse_part[:, :, 0, 0])
    loss = (1.0 + beta) * sse / jnp.float32(N * D)
    return z_q, min_encoding_indices, loss


def _reference_forward(z, embedding, beta):
    # Pure-JAX mirror of the PyTorch forward (sanity check).
    B, C, H, W = z.shape
    zf = jnp.transpose(z, (0, 2, 3, 1)).reshape(-1, C)
    d = (jnp.sum(zf ** 2, axis=1, keepdims=True)
         + jnp.sum(embedding ** 2, axis=1)
         - 2.0 * zf @ embedding.T)
    idx = jnp.argmin(d, axis=1)
    zq = embedding[idx].reshape(B, H, W, C)
    loss = (1.0 + beta) * jnp.mean((zq - jnp.transpose(z, (0, 2, 3, 1))) ** 2)
    return jnp.transpose(zq, (0, 3, 1, 2)), idx, loss


if __name__ == "__main__":
    # opt: codebook_size=16, latent_dim=4, beta=0.25
    codebook_size = 16
    latent_dim = 4
    beta = 0.25

    key = jax.random.PRNGKey(0)
    k_emb, k_z = jax.random.split(key)

    # nn.Embedding weight init: uniform(-1/codebook_size, 1/codebook_size)
    embedding = jax.random.uniform(
        k_emb, (codebook_size, latent_dim), jnp.float32,
        minval=-1.0 / codebook_size, maxval=1.0 / codebook_size)

    # input z: (B, C=latent_dim, H, W)
    z = jax.random.normal(k_z, (2, latent_dim, 16, 16), jnp.float32)

    z_q, indices, loss = codebook_forward(z, embedding, beta=beta)
    jax.block_until_ready((z_q, indices, loss))

    # sanity check against the pure-JAX reference
    zq_ref, idx_ref, loss_ref = _reference_forward(z, embedding, beta)
    assert z_q.shape == z.shape and z_q.dtype == z.dtype
    assert indices.shape == (2 * 16 * 16,)
    assert jnp.allclose(z_q, zq_ref, atol=1e-5)
    assert jnp.all(indices == idx_ref)
    assert jnp.allclose(loss, loss_ref, atol=1e-5)

    print("KERNEL_OK")
</pallas_src>

<mosaic_0001>
module attributes {stable_mosaic.version = 11 : i64} {
  func.func @_codebook_kernel(%arg0: i32, %arg1: i32, %arg2: memref<16x4xf32, #tpu.memory_space<vmem>>, %arg3: memref<4x16xf32, #tpu.memory_space<vmem>>, %arg4: memref<1x4x256xf32, #tpu.memory_space<vmem>>, %arg5: memref<1x4x256xf32, #tpu.memory_space<vmem>>, %arg6: memref<1x1x256xi32, #tpu.memory_space<vmem>>, %arg7: memref<1x1x1x128xf32, #tpu.memory_space<vmem>>) attributes {dimension_semantics = [#tpu.dimension_semantics<parallel>, #tpu.dimension_semantics<parallel>], iteration_bounds = array<i64: 2, 1>, scalar_prefetch = 0 : i64, scratch_operands = 0 : i64, tpu.core_type = #tpu.core_type<tc>, window_params = [{pipeline_mode = #tpu.pipeline_mode<synchronous>, transform_indices = @transform_0, window_bounds = array<i64: 16, 4>}, {pipeline_mode = #tpu.pipeline_mode<synchronous>, transform_indices = @transform_1, window_bounds = array<i64: 4, 16>}, {transform_indices = @transform_2, window_bounds = array<i64: 1, 4, 256>}, {transform_indices = @transform_3, window_bounds = array<i64: 1, 4, 256>}, {transform_indices = @transform_4, window_bounds = array<i64: 1, 1, 256>}, {transform_indices = @transform_5, window_bounds = array<i64: 1, 1, 1, 128>}]} {
    %c0 = arith.constant 0 : index
    %c0_0 = arith.constant 0 : index
    %c0_1 = arith.constant 0 : index
    %0 = vector.load %arg4[%c0, %c0_0, %c0_1] : memref<1x4x256xf32, #tpu.memory_space<vmem>>, vector<1x4x256xf32>
    %1 = vector.shape_cast %0 : vector<1x4x256xf32> to vector<4x256xf32>
    %c0_2 = arith.constant 0 : index
    %c0_3 = arith.constant 0 : index
    %2 = vector.load %arg2[%c0_2, %c0_3] : memref<16x4xf32, #tpu.memory_space<vmem>>, vector<16x4xf32>
    %c0_4 = arith.constant 0 : index
    %c0_5 = arith.constant 0 : index
    %3 = vector.load %arg3[%c0_4, %c0_5] : memref<4x16xf32, #tpu.memory_space<vmem>>, vector<4x16xf32>
    %4 = arith.mulf %1, %1 : vector<4x256xf32>
    %cst = arith.constant dense<0.000000e+00> : vector<256xf32>
    %5 = vector.multi_reduction <add>, %4, %cst [0] : vector<4x256xf32> to vector<256xf32>
    %6 = vector.shape_cast %5 : vector<256xf32> to vector<1x256xf32>
    %7 = arith.mulf %2, %2 : vector<16x4xf32>
    %cst_6 = arith.constant dense<0.000000e+00> : vector<16xf32>
    %8 = vector.multi_reduction <add>, %7, %cst_6 [1] : vector<16x4xf32> to vector<16xf32>
    %9 = vector.shape_cast %8 : vector<16xf32> to vector<16x1xf32>
    %cst_7 = arith.constant dense<0.000000e+00> : vector<16x256xf32>
    %10 = tpu.matmul %2, %1, %cst_7 {dimension_numbers = #tpu.dot_dimension_numbers<[1], [0], [0], [1], [0, 0, 1, 1], [], []>} : vector<16x4xf32>, vector<4x256xf32>, vector<16x256xf32> -> vector<16x256xf32>
    %11 = vector.broadcast %6 : vector<1x256xf32> to vector<16x256xf32>
    %12 = vector.broadcast %9 : vector<16x1xf32> to vector<16x256xf32>
    %13 = arith.addf %11, %12 : vector<16x256xf32>
    %cst_8 = arith.constant 2.000000e+00 : f32
    %14 = vector.broadcast %cst_8 : f32 to vector<16x256xf32>
    %15 = arith.mulf %14, %10 : vector<16x256xf32>
    %16 = arith.subf %13, %15 : vector<16x256xf32>
    %17 = tpu.iota {dimensions = array<i32: 0>} : vector<16x1xi32>
    %18 = arith.sitofp %17 : vector<16x1xi32> to vector<16x1xf32>
    %cst_9 = arith.constant dense<0x7F800000> : vector<256xf32>
    %19 = vector.multi_reduction <minimumf>, %16, %cst_9 [0] : vector<16x256xf32> to vector<256xf32>
    %20 = vector.shape_cast %19 : vector<256xf32> to vector<1x256xf32>
    %21 = vector.broadcast %20 : vector<1x256xf32> to vector<16x256xf32>
    %22 = arith.cmpf oeq, %16, %21 : vector<16x256xf32>
    %cst_10 = arith.constant 1.600000e+01 : f32
    %23 = vector.shape_cast %18 : vector<16x1xf32> to vector<16x1xf32>
    %24 = vector.broadcast %23 : vector<16x1xf32> to vector<16x256xf32>
    %25 = vector.broadcast %cst_10 : f32 to vector<16x256xf32>
    %26 = arith.select %22, %24, %25 : vector<16x256xi1>, vector<16x256xf32>
    %cst_11 = arith.constant dense<0x7F800000> : vector<256xf32>
    %27 = vector.multi_reduction <minimumf>, %26, %cst_11 [0] : vector<16x256xf32> to vector<256xf32>
    %28 = vector.shape_cast %27 : vector<256xf32> to vector<1x256xf32>
    %29 = vector.broadcast %18 : vector<16x1xf32> to vector<16x256xf32>
    %30 = vector.broadcast %28 : vector<1x256xf32> to vector<16x256xf32>
    %31 = arith.cmpf oeq, %29, %30 : vector<16x256xf32>
    %32 = arith.extui %31 : vector<16x256xi1> to vector<16x256xi32>
    %33 = arith.sitofp %32 : vector<16x256xi32> to vector<16x256xf32>
    %cst_12 = arith.constant dense<0.000000e+00> : vector<4x256xf32>
    %34 = tpu.matmul %3, %33, %cst_12 {dimension_numbers = #tpu.dot_dimension_numbers<[1], [0], [0], [1], [0, 0, 1, 1], [], []>} : vector<4x16xf32>, vector<16x256xf32>, vector<4x256xf32> -> vector<4x256xf32>
    %c0_13 = arith.constant 0 : index
    %c0_14 = arith.constant 0 : index
    %c0_15 = arith.constant 0 : index
    %35 = vector.load %arg5[%c0_13, %c0_14, %c0_15] : memref<1x4x256xf32, #tpu.memory_space<vmem>>, vector<1x4x256xf32>
    %36 = vector.shape_cast %35 : vector<1x4x256xf32> to vector<4x256xf32>
    %37 = vector.shape_cast %34 : vector<4x256xf32> to vector<1x4x256xf32>
    tpu.vector_store %arg5[%c0_13, %c0_14, %c0_15], %37 {strides = array<i32>} : memref<1x4x256xf32, #tpu.memory_space<vmem>>, vector<1x4x256xf32>,
    %38 = arith.fptosi %28 : vector<1x256xf32> to vector<1x256xi32>
    %c0_16 = arith.constant 0 : index
    %c0_17 = arith.constant 0 : index
    %c0_18 = arith.constant 0 : index
    %39 = vector.load %arg6[%c0_16, %c0_17, %c0_18] : memref<1x1x256xi32, #tpu.memory_space<vmem>>, vector<1x1x256xi32>
    %40 = vector.shape_cast %39 : vector<1x1x256xi32> to vector<1x256xi32>
    %41 = vector.shape_cast %38 : vector<1x256xi32> to vector<1x1x256xi32>
    tpu.vector_store %arg6[%c0_16, %c0_17, %c0_18], %41 {strides = array<i32>} : memref<1x1x256xi32, #tpu.memory_space<vmem>>, vector<1x1x256xi32>,
    %42 = arith.subf %34, %1 : vector<4x256xf32>
    %43 = arith.mulf %42, %42 : vector<4x256xf32>
    %cst_19 = arith.constant dense<0.000000e+00> : vector<256xf32>
    %44 = vector.multi_reduction <add>, %43, %cst_19 [0] : vector<4x256xf32> to vector<256xf32>
    %45 = vector.shape_cast %44 : vector<256xf32> to vector<1x256xf32>
    %46 = vector.shape_cast %45 : vector<1x256xf32> to vector<1x1x256xf32>
    %cst_20 = arith.constant dense<0.000000e+00> : vector<1xf32>
    %47 = vector.multi_reduction <add>, %46, %cst_20 [1, 2] : vector<1x1x256xf32> to vector<1xf32>
    %48 = vector.shape_cast %47 : vector<1xf32> to vector<1x1x1xf32>
    %49 = vector.extract %48[0, 0, 0] : f32 from vector<1x1x1xf32>
    %50 = vector.broadcast %49 : f32 to vector<1x128xf32>
    %c0_21 = arith.constant 0 : index
    %c0_22 = arith.constant 0 : index
    %c0_23 = arith.constant 0 : index
    %c0_24 = arith.constant 0 : index
    %51 = vector.load %arg7[%c0_21, %c0_22, %c0_23, %c0_24] : memref<1x1x1x128xf32, #tpu.memory_space<vmem>>, vector<1x1x1x128xf32>
    %52 = vector.shape_cast %51 : vector<1x1x1x128xf32> to vector<1x128xf32>
    %53 = vector.shape_cast %50 : vector<1x128xf32> to vector<1x1x1x128xf32>
    tpu.vector_store %arg7[%c0_21, %c0_22, %c0_23, %c0_24], %53 {strides = array<i32>} : memref<1x1x1x128xf32, #tpu.memory_space<vmem>>, vector<1x1x1x128xf32>,
    return
  }
  func.func @transform_0(%arg0: i32, %arg1: i32) -> (i32, i32) {
    %c0_i32 = arith.constant 0 : i32
    %c0_i32_0 = arith.constant 0 : i32
    %c0_i32_1 = arith.constant 0 : i32
    return %c0_i32, %c0_i32_0 : i32, i32
  }
  func.func @transform_1(%arg0: i32, %arg1: i32) -> (i32, i32) {
    %c0_i32 = arith.constant 0 : i32
    %c0_i32_0 = arith.constant 0 : i32
    %c0_i32_1 = arith.constant 0 : i32
    return %c0_i32, %c0_i32_0 : i32, i32
  }
  func.func @transform_2(%arg0: i32, %arg1: i32) -> (i32, i32, i32) {
    %c0_i32 = arith.constant 0 : i32
    %c0_i32_0 = arith.constant 0 : i32
    return %arg0, %c0_i32, %arg1 : i32, i32, i32
  }
  func.func @transform_3(%arg0: i32, %arg1: i32) -> (i32, i32, i32) {
    %c0_i32 = arith.constant 0 : i32
    %c0_i32_0 = arith.constant 0 : i32
    return %arg0, %c0_i32, %arg1 : i32, i32, i32
  }
  func.func @transform_4(%arg0: i32, %arg1: i32) -> (i32, i32, i32) {
    %c0_i32 = arith.constant 0 : i32
    %c0_i32_0 = arith.constant 0 : i32
    return %arg0, %c0_i32, %arg1 : i32, i32, i32
  }
  func.func @transform_5(%arg0: i32, %arg1: i32) -> (i32, i32, i32, i32) {
    %c0_i32 = arith.constant 0 : i32
    %c0_i32_0 = arith.constant 0 : i32
    %c0_i32_1 = arith.constant 0 : i32
    return %arg0, %arg1, %c0_i32, %c0_i32_0 : i32, i32, i32, i32
  }
}

</mosaic_0001>

<llo_original>
// kernel: codebook_forward.1
$region0: #{codebook_forward.1}
  #allocation0 [shape = 'u32[]', space=smem, size = 0x4, offset = 0x4, fixed_abs, tag = 'smem constant byte address 0x4 - core index']
  #allocation1 [shape = 'u32[144,128]{1,0:T(1,128)}', space=vmem, size = 0x12000, scoped, tag = 'internal scratch']
  %s0 = inlined_call_operand.vmem [shape: f32[16,4], index: 0, kind: input, shape index: {}]
  %s1 = inlined_call_operand.vmem [shape: f32[4,16], index: 1, kind: input, shape index: {}]
  %s2 = inlined_call_operand.vmem [shape: f32[2,4,256], index: 2, kind: input, shape index: {}]
  %s3 = inlined_call_operand.vmem [shape: f32[2,4,256], index: 3, kind: output, shape index: {0}]
  %s4 = inlined_call_operand.hbm [shape: s32[2,1,256], index: 4, kind: output, shape index: {1}]
  %s5 = inlined_call_operand.vmem [shape: f32[2,1,1,128], index: 5, kind: output, shape index: {2}]
  %6 = xla_tuple %s3, %s4, %s5
  %s7 = sld [smem:[#allocation0]]
  $region61: #{codebook_forward.1} parent=0
    _
  %s9 = ssub.s32 1, %s7
  %s10 = scalar_select 0, %s9, %s7
  $region1: #{codebook_forward.1} parent=0
    #allocation2 [shape = 'u8[2048]{0}', space=vmem, size = 0x800, scoped, tag = 'output window, operand 1']
    #allocation3 [shape = 's32[2]{0}', space=sflag, size = 0x8, scoped, tag = 'scoped memory for codebook_forward.1']
    %11 = vsyncpa [#allocation3], 0
    %s12 = scalar_lea.sflag [#allocation3], 1
    %13 = vsyncpa %s12, 0
    loop: start=0, step=1, limit=4
    $region2: #{codebook_forward.1} parent=1 // loop_pre_header
      _
    $region3: #{codebook_forward.1} parent=1 // loop_header
      %s15 = sphi 0, %s19
      %p16 = scmp.ge.s32.totalorder %s15, 4
      %s22 = sphi 0, %s34
      %s23 = sphi 0, %s30
      %s24 = sphi 0, %s22
      %s25 = sphi 0, %s23
      %s26 = sphi 0, %s24
      %s27 = sphi 0, %s25
      %s35 = sphi 0, %s35
      %s37 = sphi 0, %s35
      %s38 = sphi 0, %s37
      %s52 = sphi 0, %s38
      %s56 = sphi 0, %s56
      %s58 = sphi 0, %s56
      %s59 = sphi 0, %s58
      %s73 = sphi 0, %s59
      %s81 = sphi 0, %s83
      %s84 = sphi 0, %s81
      %s85 = sphi 0, %s84
      %s101 = sphi 0, %s85
      %s109 = sphi 0, %s111
      %s112 = sphi 0, %s109
      %s113 = sphi 0, %s112
      %s129 = sphi 0, %s113
      %s137 = sphi 0, %s139
      %s140 = sphi 0, %s137
      %s141 = sphi 0, %s140
      %s157 = sphi 0, %s141
      %s165 = sphi 0, %s167
      %s168 = sphi 0, %s165
      %s169 = sphi 0, %s168
      %s185 = sphi 0, %s169
    $region4: #{codebook_forward.1} parent=1 // loop_header_branch
      %18 = sbr.rel (%p16) target = $region8
    $region5: #{codebook_forward.1} parent=1 // loop_body
      %s20 = ssub.s32 %s15, 1
      %s21 = ssub.s32 %s15, 2
      %s28 = sadd.s32 1, %s23
      %p29 = scmp.ge.s32.totalorder %s28, 1
      %s30 = scalar_select %p29, 0, %s28
      %s31 = sadd.s32 1, %s22
      %s32 = scalar_select %p29, %s31, %s22
      %p33 = scmp.ge.s32.totalorder %s32, 2
      %s34 = scalar_select %p33, 0, %s32
      %s36 = sadd.s32 %s35, 1
      %p39 = scmp.eq.s32.totalorder %s15, 1
      %p40 = scmp.ne.s32.totalorder %s35, %s37
      %p41 = scmp.eq.s32.totalorder %s15, 0
      %p42 = por %p40, %p41
      %p43 = scmp.ne.s32.totalorder %s35, %s37
      %p44 = scmp.eq.s32.totalorder %s20, 1
      %p45 = por %p43, %p44
      %p46 = scmp.ne.s32.totalorder %s37, %s38
      %p47 = scmp.eq.s32.totalorder %s20, 0
      %p48 = por %p46, %p47
      %p49 = scmp.ne.s32.totalorder %s37, %s38
      %p50 = scmp.eq.s32.totalorder %s21, 1
      %p51 = por %p49, %p50
      %p53 = scmp.ne.s32.totalorder %s38, %s52
      %p54 = scmp.eq.s32.totalorder %s21, 0
      %p55 = por %p53, %p54
      %s57 = sadd.s32 %s56, 1
      %p60 = scmp.eq.s32.totalorder %s15, 1
      %p61 = scmp.ne.s32.totalorder %s56, %s58
      %p62 = scmp.eq.s32.totalorder %s15, 0
      %p63 = por %p61, %p62
      %p64 = scmp.ne.s32.totalorder %s56, %s58
      %p65 = scmp.eq.s32.totalorder %s20, 1
      %p66 = por %p64, %p65
      %p67 = scmp.ne.s32.totalorder %s58, %s59
      %p68 = scmp.eq.s32.totalorder %s20, 0
      %p69 = por %p67, %p68
      %p70 = scmp.ne.s32.totalorder %s58, %s59
      %p71 = scmp.eq.s32.totalorder %s21, 1
      %p72 = por %p70, %p71
      %p74 = scmp.ne.s32.totalorder %s59, %s73
      %p75 = scmp.eq.s32.totalorder %s21, 0
      %p76 = por %p74, %p75
      %s77 = ssub.s32 %s22, %s34
      %s78 = ssub.s32 %s23, %s30
      %s79 = sor.u32 %s77, %s78
      %p80 = scmp.eq.s32.totalorder %s79, 0
      %s82 = sadd.s32 %s81, 1
      %s83 = scalar_select %p80, %s81, %s82
      %p86 = pneg %p80
      %p87 = scmp.eq.s32.totalorder %s15, 1
      %p88 = por %p86, %p87
      %p89 = scmp.ne.s32.totalorder %s81, %s84
      %p90 = scmp.eq.s32.totalorder %s15, 0
      %p91 = por %p89, %p90
      %p92 = scmp.ne.s32.totalorder %s81, %s84
      %p93 = scmp.eq.s32.totalorder %s20, 1
      %p94 = por %p92, %p93
      %p95 = scmp.ne.s32.totalorder %s84, %s85
      %p96 = scmp.eq.s32.totalorder %s20, 0
      %p97 = por %p95, %p96
      %p98 = scmp.ne.s32.totalorder %s84, %s85
      %p99 = scmp.eq.s32.totalorder %s21, 1
      %p100 = por %p98, %p99
      %p102 = scmp.ne.s32.totalorder %s85, %s101
      %p103 = scmp.eq.s32.totalorder %s21, 0
      %p104 = por %p102, %p103
      %s105 = ssub.s32 %s22, %s34
      %s106 = ssub.s32 %s23, %s30
      %s107 = sor.u32 %s105, %s106
      %p108 = scmp.eq.s32.totalorder %s107, 0
      %s110 = sadd.s32 %s109, 1
      %s111 = scalar_select %p108, %s109, %s110
      %p114 = pneg %p108
      %p115 = scmp.eq.s32.totalorder %s15, 1
      %p116 = por %p114, %p115
      %p117 = scmp.ne.s32.totalorder %s109, %s112
      %p118 = scmp.eq.s32.totalorder %s15, 0
      %p119 = por %p117, %p118
      %p120 = scmp.ne.s32.totalorder %s109, %s112
      %p121 = scmp.eq.s32.totalorder %s20, 1
      %p122 = por %p120, %p121
      %p123 = scmp.ne.s32.totalorder %s112, %s113
      %p124 = scmp.eq.s32.totalorder %s20, 0
      %p125 = por %p123, %p124
      %p126 = scmp.ne.s32.totalorder %s112, %s113
      %p127 = scmp.eq.s32.totalorder %s21, 1
      %p128 = por %p126, %p127
      %p130 = scmp.ne.s32.totalorder %s113, %s129
      %p131 = scmp.eq.s32.totalorder %s21, 0
      %p132 = por %p130, %p131
      %s133 = ssub.s32 %s22, %s34
      %s134 = ssub.s32 %s23, %s30
      %s135 = sor.u32 %s133, %s134
      %p136 = scmp.eq.s32.totalorder %s135, 0
      %s138 = sadd.s32 %s137, 1
      %s139 = scalar_select %p136, %s137, %s138
      %p142 = pneg %p136
      %p143 = scmp.eq.s32.totalorder %s15, 1
      %p144 = por %p142, %p143
      %p145 = scmp.ne.s32.totalorder %s137, %s140
      %p146 = scmp.eq.s32.totalorder %s15, 0
      %p147 = por %p145, %p146
      %p148 = scmp.ne.s32.totalorder %s137, %s140
      %p149 = scmp.eq.s32.totalorder %s20, 1
      %p150 = por %p148, %p149
      %p151 = scmp.ne.s32.totalorder %s140, %s141
      %p152 = scmp.eq.s32.totalorder %s20, 0
      %p153 = por %p151, %p152
      %p154 = scmp.ne.s32.totalorder %s140, %s141
      %p155 = scmp.eq.s32.totalorder %s21, 1
      %p156 = por %p154, %p155
      %p158 = scmp.ne.s32.totalorder %s141, %s157
      %p159 = scmp.eq.s32.totalorder %s21, 0
      %p160 = por %p158, %p159
      %s161 = ssub.s32 %s22, %s34
      %s162 = ssub.s32 %s23, %s30
      %s163 = sor.u32 %s161, %s162
      %p164 = scmp.eq.s32.totalorder %s163, 0
      %s166 = sadd.s32 %s165, 1
      %s167 = scalar_select %p164, %s165, %s166
      %p170 = pneg %p164
      %p171 = scmp.eq.s32.totalorder %s15, 1
      %p172 = por %p170, %p171
      %p173 = scmp.ne.s32.totalorder %s165, %s168
      %p174 = scmp.eq.s32.totalorder %s15, 0
      %p175 = por %p173, %p174
      %p176 = scmp.ne.s32.totalorder %s165, %s168
      %p177 = scmp.eq.s32.totalorder %s20, 1
      %p178 = por %p176, %p177
      %p179 = scmp.ne.s32.totalorder %s168, %s169
      %p180 = scmp.eq.s32.totalorder %s20, 0
      %p181 = por %p179, %p180
      %p182 = scmp.ne.s32.totalorder %s168, %s169
      %p183 = scmp.eq.s32.totalorder %s21, 1
      %p184 = por %p182, %p183
      %p186 = scmp.ne.s32.totalorder %s169, %s185
      %p187 = scmp.eq.s32.totalorder %s21, 0
      %p188 = por %p186, %p187
      %p189 = scmp.le.s32.totalorder 1, %s15
      %p190 = scmp.lt.s32.totalorder %s15, 3
      %p191 = pnand %p189, %p190
      %p192 = pneg %p191
      // Predicated region
      $region9: #{codebook_forward.1} parent=5 // pred_check
        _
      $region10: #{codebook_forward.1} parent=5 // pred_check_branch
        %194 = sbr.rel (%p191) target = $region12
      $region11: #{codebook_forward.1} parent=5 // pred_region
        %s195 = ssub.s32 %s15, 1
        // Predicated region
        $region13: #{codebook_forward.1} parent=11 // pred_check
          %p196 = pneg %p48
        $region14: #{codebook_forward.1} parent=11 // pred_check_branch
          %198 = sbr.rel (%p196) target = $region16
        $region15: #{codebook_forward.1} parent=11 // pred_region
          _
        $region16: #{codebook_forward.1} parent=11 // pred_fallthru
          _
        // Predicated region
        $region17: #{codebook_forward.1} parent=11 // pred_check
          %p199 = pneg %p69
        $region18: #{codebook_forward.1} parent=11 // pred_check_branch
          %201 = sbr.rel (%p199) target = $region20
        $region19: #{codebook_forward.1} parent=11 // pred_region
          _
        $region20: #{codebook_forward.1} parent=11 // pred_fallthru
          _
      $region12: #{codebook_forward.1} parent=5 // pred_fallthru
        _
      %p202 = scmp.lt.s32.totalorder %s15, 2
      // Predicated region
      $region21: #{codebook_forward.1} parent=5 // pred_check
        %p203 = pneg %p202
      $region22: #{codebook_forward.1} parent=5 // pred_check_branch
        %205 = sbr.rel (%p203) target = $region24
      $region23: #{codebook_forward.1} parent=5 // pred_region
        // Predicated region
        $region25: #{codebook_forward.1} parent=23 // pred_check
          %p206 = pneg %p91
        $region26: #{codebook_forward.1} parent=23 // pred_check_branch
          %208 = sbr.rel (%p206) target = $region28
        $region27: #{codebook_forward.1} parent=23 // pred_region
          %s209 = smul.u32 2, %s23
          %p210 = scmp.lt.s32.totalorder %s22, 1
          %s211 = scalar_select %p210, %s22, 1
          %p212 = scmp.lt.s32.totalorder %s209, 1
          %s213 = scalar_select %p212, %s209, 1
          %s214 = smul.addr %s211, 2
          %s215 = sadd.s32 %s213, %s214
          %s216 = smul.addr %s215, 4
          %s217 = scalar_lea.vmem %s2, %s216
          %s218 = smul.u32 2, %s23
        $region28: #{codebook_forward.1} parent=23 // pred_fallthru
          _
      $region24: #{codebook_forward.1} parent=5 // pred_fallthru
        _
      %p219 = scmp.le.s32.totalorder 1, %s15
      %p220 = scmp.lt.s32.totalorder %s15, 3
      %p221 = pnand %p219, %p220
      %p222 = pneg %p221
      // Predicated region
      $region29: #{codebook_forward.1} parent=5 // pred_check
        _
      $region30: #{codebook_forward.1} parent=5 // pred_check_branch
        %224 = sbr.rel (%p221) target = $region32
      $region31: #{codebook_forward.1} parent=5 // pred_region
        %s225 = ssub.s32 %s15, 1
        %p226 = pneg %p48
        %p227 = pneg %p45
        %p228 = pneg %p69
        %p229 = pneg %p66
        %s230 = smul.u32 2, %s25
        %p231 = scmp.lt.s32.totalorder %s24, 1
        %s232 = scalar_select %p231, %s24, 1
        %p233 = scmp.lt.s32.totalorder %s230, 1
        %s234 = scalar_select %p233, %s230, 1
        %s235 = smul.addr %s232, 2
        %s236 = sadd.s32 %s234, %s235
        %s237 = smul.addr %s236, 4
        %s238 = scalar_lea.vmem %s2, %s237
        %p239 = pneg %p97
        %p240 = pneg %p94
        %p241 = pneg %p125
        %p242 = pneg %p122
        %s243 = smul.u32 2, %s25
        %p244 = scmp.lt.s32.totalorder %s24, 1
        %s245 = scalar_select %p244, %s24, 1
        %p246 = scmp.lt.s32.totalorder %s243, 1
        %s247 = scalar_select %p246, %s243, 1
        %s248 = smul.addr %s245, 2
        %s249 = sadd.s32 %s247, %s248
        %s250 = smul.addr %s249, 4
        %s251 = scalar_lea.vmem %s3, %s250
        %p252 = pneg %p153
        %p253 = pneg %p150
        %s254 = sand.u32 %s140, 1
        %s255 = scalar_lea.sflag [#allocation3], %s254
        %s256 = sand.u32 %s140, 1
        %s257 = smul.addr %s256, 2
        %s258 = scalar_lea.vmem [#allocation2], %s257
        %p259 = pneg %p181
        %p260 = pneg %p178
        %p261 = scmp.lt.s32.totalorder %s24, 1
        %s262 = scalar_select %p261, %s24, 1
        %p263 = scmp.lt.s32.totalorder %s25, 0
        %s264 = scalar_select %p263, %s25, 0
        %s265 = sadd.s32 %s264, %s262
        %s266 = scalar_lea.vmem %s5, %s265
        %s267 = smul.u32 2, %s25
        %p268 = scmp.lt.s32.totalorder %s24, 1
        %s269 = scalar_select %p268, %s24, 1
        %p270 = scmp.lt.s32.totalorder %s267, 1
        %s271 = scalar_select %p270, %s267, 1
        %s272 = smul.addr %s269, 2
        %s273 = sadd.s32 %s271, %s272
        %s274 = smul.addr %s273, 4
        %s275 = scalar_lea.vmem %s2, %s274
        %s276 = smul.u32 2, %s25
        %s277 = smul.u32 2, %s25
        %p278 = scmp.lt.s32.totalorder %s24, 1
        %s279 = scalar_select %p278, %s24, 1
        %p280 = scmp.lt.s32.totalorder %s277, 1
        %s281 = scalar_select %p280, %s277, 1
        %s282 = smul.addr %s279, 2
        %s283 = sadd.s32 %s281, %s282
        %s284 = smul.addr %s283, 4
        %s285 = scalar_lea.vmem %s3, %s284
        %s286 = smul.u32 2, %s25
        %s287 = smul.u32 2, %s25
        %p288 = scmp.lt.s32.totalorder %s24, 1
        %s289 = scalar_select %p288, %s24, 1
        %p290 = scmp.lt.s32.totalorder %s25, 0
        %s291 = scalar_select %p290, %s25, 0
        %s292 = sadd.s32 %s291, %s289
        %s293 = scalar_lea.vmem %s5, %s292
        %v294 = vld [vmem:[%s275] sm:$0xff]
        %v295 = vld [vmem:[%s0] sm:$0xff]
        %v296 = vld [vmem:[%s0 + $0x8] sm:$0xff]
        %v297 = vld [vmem:[%s1] sm:$0xf]
        %v298 = vmul.f32 %v294, %v294
        %v300 = vcombine.high %v298, %v298
        %vm302 = vcmask 1043456
        %v303 = vsel %vm302, %v298, 0.0
        %v304 = vrot.slane %v303, 4
        %v305 = vadd.f32 %v303, %v304
        %v306 = vrot.slane %v305, 2
        %v307 = vadd.f32 %v305, %v306
        %v308 = vrot.slane %v307, 1
        %v309 = vadd.f32 %v307, %v308
        %v310 = vsel %vm302, %v300, 0.0
        %v311 = vrot.slane %v310, 4
        %v312 = vadd.f32 %v310, %v311
        %v313 = vrot.slane %v312, 2
        %v314 = vadd.f32 %v312, %v313
        %v315 = vrot.slane %v314, 1
        %v316 = vadd.f32 %v314, %v315
        %v317 = vmul.f32 %v295, %v295
        %v318 = vmul.f32 %v296, %v296
        %vm319 = vcmask 31744
        %v320 = vsel %vm319, %v317, 0.0
        %321 = vadd.xlane.f32.xlu0 %v320
        %v322 = vpop.xlane.xlu0 %321
        %v323 = vsel %vm319, %v318, 0.0
        %324 = vadd.xlane.f32.xlu0 %v323
        %v325 = vpop.xlane.xlu0 %324
        %v327 = vcombine.high %v294, %v294
        %v329 = vsel %vm319, %v295, 0
        %v332 = vsel %vm319, %v296, 0
        %v334 = vsel %vm302, %v294, 0
        %v336 = vsel %vm302, %v327, 0
        %338 = vmatprep.subr.mxu0 0.0
        %339 = vmatpush1.msra.mxu0 0.0
        %340 = vmatprep.subr.mxu0 0.0
        %341 = vmatpush1.msra.mxu0 0.0
        %342 = vmatprep.subr.mxu0 0.0
        %343 = vmatpush1.msra.mxu0 0.0
        %344 = vmatprep.subr.mxu0 0.0
        %345 = vmatpush1.msra.mxu0 0.0
        %346 = vmatprep.subr.mxu0 0.0
        %347 = vmatpush1.msra.mxu0 0.0
        %348 = vmatprep.subr.mxu0 0.0
        %349 = vmatpush1.msra.mxu0 0.0
        %350 = vmatprep.subr.mxu0 0.0
        %351 = vmatpush1.msra.mxu0 0.0
        %352 = vmatprep.subr.mxu0 0.0
        %353 = vmatpush1.msra.mxu0 0.0
        %354 = vmatprep.subr.mxu0 0.0
        %355 = vmatpush1.msra.mxu0 0.0
        %356 = vmatprep.subr.mxu0 0.0
        %357 = vmatpush1.msra.mxu0 0.0
        %358 = vmatprep.subr.mxu0 0.0
        %359 = vmatpush1.msra.mxu0 0.0
        %360 = vmatprep.subr.mxu0 0.0
        %361 = vmatpush1.msra.mxu0 0.0
        %362 = vmatprep.subr.mxu0 0.0
        %363 = vmatpush1.msra.mxu0 0.0
        %364 = vmatprep.subr.mxu0 0.0
        %365 = vmatpush1.msra.mxu0 0.0
        %366 = vmatprep.subr.mxu0 0.0
        %367 = vmatpush1.msra.mxu0 0.0
        %368 = vmatprep.subr.mxu0 %v336
        %369 = vmatpush1.msra.mxu0 %v334
        %370 = vmatprep.subr.mxu0 0.0
        %371 = vmatpush2.msra.mxu0 0.0
        %372 = vmatprep.subr.mxu0 0.0
        %373 = vmatpush2.msra.mxu0 0.0
        %374 = vmatprep.subr.mxu0 0.0
        %375 = vmatpush2.msra.mxu0 0.0
        %376 = vmatprep.subr.mxu0 0.0
        %377 = vmatpush2.msra.mxu0 0.0
        %378 = vmatprep.subr.mxu0 0.0
        %379 = vmatpush2.msra.mxu0 0.0
        %380 = vmatprep.subr.mxu0 0.0
        %381 = vmatpush2.msra.mxu0 0.0
        %382 = vmatprep.subr.mxu0 0.0
        %383 = vmatpush2.msra.mxu0 0.0
        %384 = vmatprep.subr.mxu0 0.0
        %385 = vmatpush2.msra.mxu0 0.0
        %386 = vmatprep.subr.mxu0 0.0
        %387 = vmatpush2.msra.mxu0 0.0
        %388 = vmatprep.subr.mxu0 0.0
        %389 = vmatpush2.msra.mxu0 0.0
        %390 = vmatprep.subr.mxu0 0.0
        %391 = vmatpush2.msra.mxu0 0.0
        %392 = vmatprep.subr.mxu0 0.0
        %393 = vmatpush2.msra.mxu0 0.0
        %394 = vmatprep.subr.mxu0 0.0
        %395 = vmatpush2.msra.mxu0 0.0
        %396 = vmatprep.subr.mxu0 0.0
        %397 = vmatpush2.msra.mxu0 0.0
        %398 = vmatprep.subr.mxu0 0.0
        %399 = vmatpush2.msra.mxu0 0.0
        %400 = vmatprep.subr.mxu0 0.0
        %401 = vmatpush2.msra.mxu0 0.0
        %402 = vmatprep.mubr.f32.mxu0 0.0
        %403 = vmatmul.mubr.f32.gmra.mxu0 %v329
        %v404 = vpop.f32.mrf.mxu0
        %v405 = vadd.f32 0.0, %v404
        %v406 = vpop.f32.mrf.mxu0
        %v407 = vadd.f32 0.0, %v406
        %408 = vmatprep.mubr.f32.mxu0 0.0
        %409 = vmatmul.mubr.f32.gmra.mxu0 %v332
        %v410 = vpop.f32.mrf.mxu0
        %v411 = vadd.f32 0.0, %v410
        %v412 = vpop.f32.mrf.mxu0
        %v413 = vadd.f32 0.0, %v412
        %414 = vdwg.mxu0
        %v415 = vadd.f32 %v309, %v322
        %v416 = vadd.f32 %v316, %v322
        %v417 = vadd.f32 %v309, %v325
        %v418 = vadd.f32 %v316, %v325
        %v419 = vmul.f32 %v405, 2.0
        %v420 = vmul.f32 %v407, 2.0
        %v421 = vmul.f32 %v411, 2.0
        %v422 = vmul.f32 %v413, 2.0
        %v423 = vsub.f32 %v415, %v419
        %v424 = vsub.f32 %v416, %v420
        %v425 = vsub.f32 %v417, %v421
        %v426 = vsub.f32 %v418, %v422
        %v427 = vlaneseq
        %v428 = vshrl.u32 %v427, 7
        %v429 = vadd.s32 %v428, 8
        %v430 = vcvt.s32.f32 %v428
        %v431 = vcvt.s32.f32 %v429
        %v432 = vmin.f32 %v423, %v425
        %v433 = vrot.slane %v432, 4
        %v434 = vmin.f32 %v432, %v433
        %v435 = vrot.slane %v434, 2
        %v436 = vmin.f32 %v434, %v435
        %v437 = vrot.slane %v436, 1
        %v438 = vmin.f32 %v436, %v437
        %v439 = vmin.f32 %v424, %v426
        %v440 = vrot.slane %v439, 4
        %v441 = vmin.f32 %v439, %v440
        %v442 = vrot.slane %v441, 2
        %v443 = vmin.f32 %v441, %v442
        %v444 = vrot.slane %v443, 1
        %v445 = vmin.f32 %v443, %v444
        %vm446 = vcmp.eq.f32.partialorder %v423, %v438
        %vm447 = vcmp.eq.f32.partialorder %v424, %v445
        %vm448 = vcmp.eq.f32.partialorder %v425, %v438
        %vm449 = vcmp.eq.f32.partialorder %v426, %v445
        %v450 = vsel %vm446, %v430, 16.0
        %v451 = vsel %vm447, %v430, 16.0
        %v452 = vsel %vm448, %v431, 16.0
        %v453 = vsel %vm449, %v431, 16.0
        %v454 = vmin.f32 %v450, %v452
        %v455 = vrot.slane %v454, 4
        %v456 = vmin.f32 %v454, %v455
        %v457 = vrot.slane %v456, 2
        %v458 = vmin.f32 %v456, %v457
        %v459 = vrot.slane %v458, 1
        %v460 = vmin.f32 %v458, %v459
        %v461 = vmin.f32 %v451, %v453
        %v462 = vrot.slane %v461, 4
        %v463 = vmin.f32 %v461, %v462
        %v464 = vrot.slane %v463, 2
        %v465 = vmin.f32 %v463, %v464
        %v466 = vrot.slane %v465, 1
        %v467 = vmin.f32 %v465, %v466
        %vm468 = vcmp.eq.f32.partialorder %v430, %v460
        %vm469 = vcmp.eq.f32.partialorder %v430, %v467
        %vm470 = vcmp.eq.f32.partialorder %v431, %v460
        %vm471 = vcmp.eq.f32.partialorder %v431, %v467
        %v472 = vsel %vm468, 1, 0
        %v473 = vsel %vm469, 1, 0
        %v474 = vsel %vm470, 1, 0
        %v475 = vsel %vm471, 1, 0
        %v476 = vcvt.s32.f32 %v472
        %v477 = vcvt.s32.f32 %v473
        %v478 = vcvt.s32.f32 %v474
        %v479 = vcvt.s32.f32 %v475
        %vm480 = vcmask 130048
        %v482 = vsel %vm480, %v297, 0
        %484 = vmatprep.subr.mxu0 0.0
        %485 = vmatpush1.msra.mxu0 0.0
        %486 = vmatprep.subr.mxu0 0.0
        %487 = vmatpush1.msra.mxu0 0.0
        %488 = vmatprep.subr.mxu0 0.0
        %489 = vmatpush1.msra.mxu0 0.0
        %490 = vmatprep.subr.mxu0 0.0
        %491 = vmatpush1.msra.mxu0 0.0
        %492 = vmatprep.subr.mxu0 0.0
        %493 = vmatpush1.msra.mxu0 0.0
        %494 = vmatprep.subr.mxu0 0.0
        %495 = vmatpush1.msra.mxu0 0.0
        %496 = vmatprep.subr.mxu0 0.0
        %497 = vmatpush1.msra.mxu0 0.0
        %498 = vmatprep.subr.mxu0 0.0
        %499 = vmatpush1.msra.mxu0 0.0
        %500 = vmatprep.subr.mxu0 0.0
        %501 = vmatpush1.msra.mxu0 0.0
        %502 = vmatprep.subr.mxu0 0.0
        %503 = vmatpush1.msra.mxu0 0.0
        %504 = vmatprep.subr.mxu0 0.0
        %505 = vmatpush1.msra.mxu0 0.0
        %506 = vmatprep.subr.mxu0 0.0
        %507 = vmatpush1.msra.mxu0 0.0
        %508 = vmatprep.subr.mxu0 0.0
        %509 = vmatpush1.msra.mxu0 0.0
        %510 = vmatprep.subr.mxu0 0.0
        %511 = vmatpush1.msra.mxu0 0.0
        %512 = vmatprep.subr.mxu0 %v479
        %513 = vmatpush1.msra.mxu0 %v478
        %514 = vmatprep.subr.mxu0 %v477
        %515 = vmatpush1.msra.mxu0 %v476
        %516 = vmatprep.subr.mxu0 0.0
        %517 = vmatpush2.msra.mxu0 0.0
        %518 = vmatprep.subr.mxu0 0.0
        %519 = vmatpush2.msra.mxu0 0.0
        %520 = vmatprep.subr.mxu0 0.0
        %521 = vmatpush2.msra.mxu0 0.0
        %522 = vmatprep.subr.mxu0 0.0
        %523 = vmatpush2.msra.mxu0 0.0
        %524 = vmatprep.subr.mxu0 0.0
        %525 = vmatpush2.msra.mxu0 0.0
        %526 = vmatprep.subr.mxu0 0.0
        %527 = vmatpush2.msra.mxu0 0.0
        %528 = vmatprep.subr.mxu0 0.0
        %529 = vmatpush2.msra.mxu0 0.0
        %530 = vmatprep.subr.mxu0 0.0
        %531 = vmatpush2.msra.mxu0 0.0
        %532 = vmatprep.subr.mxu0 0.0
        %533 = vmatpush2.msra.mxu0 0.0
        %534 = vmatprep.subr.mxu0 0.0
        %535 = vmatpush2.msra.mxu0 0.0
        %536 = vmatprep.subr.mxu0 0.0
        %537 = vmatpush2.msra.mxu0 0.0
        %538 = vmatprep.subr.mxu0 0.0
        %539 = vmatpush2.msra.mxu0 0.0
        %540 = vmatprep.subr.mxu0 0.0
        %541 = vmatpush2.msra.mxu0 0.0
        %542 = vmatprep.subr.mxu0 0.0
        %543 = vmatpush2.msra.mxu0 0.0
        %544 = vmatprep.subr.mxu0 0.0
        %545 = vmatpush2.msra.mxu0 0.0
        %546 = vmatprep.subr.mxu0 0.0
        %547 = vmatpush2.msra.mxu0 0.0
        %548 = vmatprep.mubr.f32.mxu0 0.0
        %549 = vmatmul.mubr.f32.gmra.mxu0 %v482
        %v550 = vpop.f32.mrf.mxu0
        %v551 = vadd.f32 0.0, %v550
        %v552 = vpop.f32.mrf.mxu0
        %v553 = vadd.f32 0.0, %v552
        %554 = vdwg.mxu0
        %v557 = vcombine.low %v551, %v553
        %559 = vst [vmem:[%s285] sm:$0xff] %v557
        %v560 = vcvt.f32.s32.to.zero.pseudo %v460
        %v561 = vcvt.f32.s32.to.zero.pseudo %v467
        %v562 = vcombine.low %v560, %v561
        %v564 = vunpack.c.l.s4 1966171168
        %v565 = vunpack.c.0.s8 %v564
        %v566 = vlaneseq
        %v567 = vshrl.u32 %v566, 7
        %v568 = vsub.s32 %v565, %v567
        %v569 = vrot.slane %v562, %v568
        %v571 = vunpack.c.l.s4 1966171168
        %v572 = vunpack.c.0.s8 %v571
        %v573 = vlaneseq
        %v574 = vshrl.u32 %v573, 7
        %v575 = vsub.s32 %v572, %v574
        %v576 = vrot.slane %v569, %v575
        %v577 = vlaneseq
        %vm578 = vcmp.ge.s32.totalorder %v577, 0
        %vm579 = vcmp.lt.s32.totalorder %v577, 256
        %vm580 = vmand %vm578, %vm579
        %581 = vst.msk [vmem:[%s258] sm:$0x3] %vm580, %v576
        %v583 = vsub.f32 %v551, %v294
        %v584 = vsub.f32 %v553, %v327
        %v585 = vmul.f32 %v583, %v583
        %v586 = vmul.f32 %v584, %v584
        %v587 = vsel %vm302, %v585, 0.0
        %v588 = vrot.slane %v587, 4
        %v589 = vadd.f32 %v587, %v588
        %v590 = vrot.slane %v589, 2
        %v591 = vadd.f32 %v589, %v590
        %v592 = vrot.slane %v591, 1
        %v593 = vadd.f32 %v591, %v592
        %v594 = vsel %vm302, %v586, 0.0
        %v595 = vrot.slane %v594, 4
        %v596 = vadd.f32 %v594, %v595
        %v597 = vrot.slane %v596, 2
        %v598 = vadd.f32 %v596, %v597
        %v599 = vrot.slane %v598, 1
        %v600 = vadd.f32 %v598, %v599
        %vm601 = vcmask 1040384
        %v602 = vsel %vm601, %v593, 0.0
        %v603 = vsel %vm601, %v600, 0.0
        %v604 = vadd.f32 %v602, %v603
        %605 = vadd.xlane.f32.xlu0 %v604
        %v606 = vpop.xlane.xlu0 %605
        %v607 = vrot.slane %v606, 4
        %v608 = vadd.f32 %v606, %v607
        %v609 = vrot.slane %v608, 2
        %v610 = vadd.f32 %v608, %v609
        %v611 = vrot.slane %v610, 1
        %v612 = vadd.f32 %v610, %v611
        %s613 = vtos %v612
        %v614 = vstv %s613
        %615 = vst [vmem:[%s293] sm:$0x1] %v614
        %s616 = smul.u32 2, %s25
        %p617 = scmp.lt.s32.totalorder %s24, 1
        %s618 = scalar_select %p617, %s24, 1
        %p619 = scmp.lt.s32.totalorder %s616, 1
        %s620 = scalar_select %p619, %s616, 1
        %s621 = smul.addr %s618, 2
        %s622 = sadd.s32 %s620, %s621
        %s623 = smul.addr %s622, 4
        %s624 = scalar_lea.vmem %s3, %s623
        %s625 = sand.u32 %s140, 1
        %s626 = scalar_lea.sflag [#allocation3], %s625
        %s627 = sand.u32 %s140, 1
        %s628 = smul.addr %s627, 2
        %s629 = scalar_lea.vmem [#allocation2], %s628
        %p630 = scmp.lt.s32.totalorder %s24, 1
        %s631 = scalar_select %p630, %s24, 1
        %p632 = scmp.lt.s32.totalorder %s25, 0
        %s633 = scalar_select %p632, %s25, 0
        %s634 = sadd.s32 %s633, %s631
        %s635 = scalar_lea.vmem %s5, %s634
        // Predicated region
        $region33: #{codebook_forward.1} parent=31 // pred_check
          %p636 = pneg %p122
        $region34: #{codebook_forward.1} parent=31 // pred_check_branch
          %638 = sbr.rel (%p636) target = $region36
        $region35: #{codebook_forward.1} parent=31 // pred_region
          %s639 = smul.u32 2, %s25
        $region36: #{codebook_forward.1} parent=31 // pred_fallthru
          _
        // Predicated region
        $region37: #{codebook_forward.1} parent=31 // pred_check
          %p640 = pneg %p150
        $region38: #{codebook_forward.1} parent=31 // pred_check_branch
          %642 = sbr.rel (%p640) target = $region40
        $region39: #{codebook_forward.1} parent=31 // pred_region
          %s643 = smul.u32 2, %s25
          %s645 = ssub.s32 32, 32
          %646 = vsyncadd %s626, %s645
          %s647 = smul.addr %s24, 2
          %s648 = sadd.s32 %s643, %s647
          %s649 = smul.addr %s648, 16
          %s650 = scalar_lea.hbm %s4, %s649
          %s652 = sshll.u32 %s629, 4
          %s653 = int_to_ptr.vmem [resolvable:$true] %s652
          %655 = dma.vmem_to_hbm [thread:$0]  %s653, 32, %s650, %s626
        $region40: #{codebook_forward.1} parent=31 // pred_fallthru
          _
        // Predicated region
        $region41: #{codebook_forward.1} parent=31 // pred_check
          %p656 = pneg %p178
        $region42: #{codebook_forward.1} parent=31 // pred_check_branch
          %658 = sbr.rel (%p656) target = $region44
        $region43: #{codebook_forward.1} parent=31 // pred_region
          _
        $region44: #{codebook_forward.1} parent=31 // pred_fallthru
          _
      $region32: #{codebook_forward.1} parent=5 // pred_fallthru
        _
      %p659 = scmp.le.s32.totalorder 2, %s15
      // Predicated region
      $region45: #{codebook_forward.1} parent=5 // pred_check
        %p660 = pneg %p659
      $region46: #{codebook_forward.1} parent=5 // pred_check_branch
        %662 = sbr.rel (%p660) target = $region48
      $region47: #{codebook_forward.1} parent=5 // pred_region
        %s663 = ssub.s32 %s15, 2
        // Predicated region
        $region49: #{codebook_forward.1} parent=47 // pred_check
          %p664 = pneg %p128
        $region50: #{codebook_forward.1} parent=47 // pred_check_branch
          %666 = sbr.rel (%p664) target = $region52
        $region51: #{codebook_forward.1} parent=47 // pred_region
          %s667 = smul.u32 2, %s27
          %p668 = scmp.lt.s32.totalorder %s26, 1
          %s669 = scalar_select %p668, %s26, 1
          %p670 = scmp.lt.s32.totalorder %s667, 1
          %s671 = scalar_select %p670, %s667, 1
          %s672 = smul.addr %s669, 2
          %s673 = sadd.s32 %s671, %s672
          %s674 = smul.addr %s673, 4
          %s675 = scalar_lea.vmem %s3, %s674
        $region52: #{codebook_forward.1} parent=47 // pred_fallthru
          _
        // Predicated region
        $region53: #{codebook_forward.1} parent=47 // pred_check
          %p676 = pneg %p156
        $region54: #{codebook_forward.1} parent=47 // pred_check_branch
          %678 = sbr.rel (%p676) target = $region56
        $region55: #{codebook_forward.1} parent=47 // pred_region
          %s679 = sand.u32 %s141, 1
          %s680 = scalar_lea.sflag [#allocation3], %s679
          %s681 = sand.u32 %s141, 1
          %s682 = smul.addr %s681, 2
          %s683 = scalar_lea.vmem [#allocation2], %s682
          %684 = dma.done %s680, 32
        $region56: #{codebook_forward.1} parent=47 // pred_fallthru
          _
        // Predicated region
        $region57: #{codebook_forward.1} parent=47 // pred_check
          %p685 = pneg %p184
        $region58: #{codebook_forward.1} parent=47 // pred_check_branch
          %687 = sbr.rel (%p685) target = $region60
        $region59: #{codebook_forward.1} parent=47 // pred_region
          %p688 = scmp.lt.s32.totalorder %s26, 1
          %s689 = scalar_select %p688, %s26, 1
          %p690 = scmp.lt.s32.totalorder %s27, 0
          %s691 = scalar_select %p690, %s27, 0
          %s692 = sadd.s32 %s691, %s689
          %s693 = scalar_lea.vmem %s5, %s692
        $region60: #{codebook_forward.1} parent=47 // pred_fallthru
          _
      $region48: #{codebook_forward.1} parent=5 // pred_fallthru
        _
    $region6: #{codebook_forward.1} parent=1 // loop_footer
      %s19 = sadd.s32 1, %s15
    $region7: #{codebook_forward.1} parent=1 // loop_footer_branch
      %14 = sbr.rel target = $region3
    $region8: #{codebook_forward.1} parent=1 // loop_exit
      _
    %694 = vsyncpa [#allocation3], 1
    %s695 = scalar_lea.sflag [#allocation3], 1
    %696 = vsyncpa %s695, 1

</llo_original>
